<compile_context>
chip_gen: v6e
topology: v6e:2x2x1
jax: 0.10.0
libtpu: 0.0.40
codegen_flags: <defaults>
</compile_context>

<pallas_src>
import jax
import jax.numpy as jnp
from jax.experimental import pallas as pl
from jax.experimental.pallas import tpu as pltpu


Z_DIM = 64            # logical z dimension (matches the PyTorch module default)
X_DIM = 20            # number of x categories (fixed in the PyTorch module)
DEFAULT_BLOCK_B = 8192  # batch tile: big enough to amortize per-step overhead,
                        # small enough for v5e's 16 MiB default scoped VMEM.


# ----------------------------------------------------------------------------
# Compose kernel: the per-call hot path -- a single small matmul per batch tile.
#   out[b, z] = sum_x dist[b, x] * qt[x, z]
# qt is the already-normalized, already-transposed conditional (X_DIM, Z_DIM).
# ----------------------------------------------------------------------------
def compose_kernel(dist_ref, qt_ref, out_ref):
    acc = jnp.dot(dist_ref[...], qt_ref[...],
                  preferred_element_type=jnp.float32)      # (tb, Z_DIM) f32 accumulate
    out_ref[...] = acc.astype(out_ref.dtype)


def prepare_q(q_z_x):
    """softmax over z (dim 0) of the (Z_DIM, X_DIM) parameter, transposed to (X_DIM, Z_DIM).

    Depends only on the parameter -- compute once at parameter-update time and
    cache; a 64x20 softmax is far below the cost of a Pallas launch, so plain
    jnp is the right tool here.
    """
    return jax.nn.softmax(q_z_x.astype(jnp.float32), axis=0).T   # (X_DIM, Z_DIM)


def compose(dist, qt, *, block_b=DEFAULT_BLOCK_B, out_dtype=None):
    """dist: (B, X_DIM) distribution over x; qt: (X_DIM, Z_DIM) prepared conditional."""
    B, X = dist.shape
    assert X == X_DIM and qt.shape == (X_DIM, Z_DIM)
    if out_dtype is None:
        out_dtype = dist.dtype

    tb = min(block_b, B)            # tiny B -> single full-array block
    grid = (pl.cdiv(B, tb),)        # ragged last block is masked by Pallas

    return pl.pallas_call(
        compose_kernel,
        out_shape=jax.ShapeDtypeStruct((B, Z_DIM), out_dtype),
        grid=grid,
        in_specs=[
            pl.BlockSpec((tb, X_DIM), lambda i: (i, 0)),   # batch tile of dist
            pl.BlockSpec((X_DIM, Z_DIM), lambda i: (0, 0)),  # qt resident across the grid
        ],
        out_specs=pl.BlockSpec((tb, Z_DIM), lambda i: (i, 0)),
        compiler_params=pltpu.CompilerParams(
            dimension_semantics=("parallel",)),            # shard grid across v7x's 2 TCs
    )(dist, qt)


def discrete_encoder(q_z_x, dist):
    """Full forward pass: softmax(q_z_x, 0) then compose with dist.

    In real use, cache `prepare_q(q_z_x)` across forward calls (it only changes
    when the parameter changes) and call `compose(dist, qt)` directly.
    """
    qt = prepare_q(q_z_x)
    return compose(dist, qt)


def reference(q_z_x, dist):
    q = jax.nn.softmax(q_z_x, axis=0)
    return dist @ q.T


if __name__ == "__main__":
    key = jax.random.PRNGKey(0)
    k_param, k_dist = jax.random.split(key)

    # Parameter init (matches torch: zeros(z_dim, 20).normal_())
    q_z_x = jax.random.normal(k_param, (Z_DIM, X_DIM), dtype=jnp.float32)

    # Example input distribution p(x): batch=2, 20 categories
    B = 2
    logits = jax.random.normal(k_dist, (B, X_DIM), dtype=jnp.float32)
    dist = jax.nn.softmax(logits, axis=-1)

    out = discrete_encoder(q_z_x, dist)
    out = jax.block_until_ready(out)

    ref = reference(q_z_x, dist)
    assert out.shape == (B, Z_DIM)
    assert jnp.allclose(out, ref, atol=1e-5, rtol=1e-5), "mismatch vs reference"

    print("KERNEL_OK")
</pallas_src>

<mosaic_0001>
module attributes {stable_mosaic.version = 11 : i64} {
  func.func @compose_kernel(%arg0: i32, %arg1: memref<2x20xf32, #tpu.memory_space<vmem>>, %arg2: memref<20x64xf32, #tpu.memory_space<vmem>>, %arg3: memref<2x64xf32, #tpu.memory_space<vmem>>) attributes {dimension_semantics = [#tpu.dimension_semantics<parallel>], iteration_bounds = array<i64: 1>, scalar_prefetch = 0 : i64, scratch_operands = 0 : i64, tpu.core_type = #tpu.core_type<tc>, window_params = [{transform_indices = @transform_0, window_bounds = array<i64: 2, 20>}, {pipeline_mode = #tpu.pipeline_mode<synchronous>, transform_indices = @transform_1, window_bounds = array<i64: 20, 64>}, {transform_indices = @transform_2, window_bounds = array<i64: 2, 64>}]} {
    %c0 = arith.constant 0 : index
    %c0_0 = arith.constant 0 : index
    %0 = vector.load %arg1[%c0, %c0_0] : memref<2x20xf32, #tpu.memory_space<vmem>>, vector<2x20xf32>
    %c0_1 = arith.constant 0 : index
    %c0_2 = arith.constant 0 : index
    %1 = vector.load %arg2[%c0_1, %c0_2] : memref<20x64xf32, #tpu.memory_space<vmem>>, vector<20x64xf32>
    %cst = arith.constant dense<0.000000e+00> : vector<2x64xf32>
    %2 = tpu.matmul %0, %1, %cst {dimension_numbers = #tpu.dot_dimension_numbers<[1], [0], [0], [1], [0, 0, 1, 1], [], []>} : vector<2x20xf32>, vector<20x64xf32>, vector<2x64xf32> -> vector<2x64xf32>
    %c0_3 = arith.constant 0 : index
    %c0_4 = arith.constant 0 : index
    %3 = vector.load %arg3[%c0_3, %c0_4] : memref<2x64xf32, #tpu.memory_space<vmem>>, vector<2x64xf32>
    tpu.vector_store %arg3[%c0_3, %c0_4], %2 {strides = array<i32>} : memref<2x64xf32, #tpu.memory_space<vmem>>, vector<2x64xf32>,
    return
  }
  func.func @transform_0(%arg0: i32) -> (i32, i32) {
    %c0_i32 = arith.constant 0 : i32
    %c0_i32_0 = arith.constant 0 : i32
    return %arg0, %c0_i32 : i32, i32
  }
  func.func @transform_1(%arg0: i32) -> (i32, i32) {
    %c0_i32 = arith.constant 0 : i32
    %c0_i32_0 = arith.constant 0 : i32
    %c0_i32_1 = arith.constant 0 : i32
    return %c0_i32, %c0_i32_0 : i32, i32
  }
  func.func @transform_2(%arg0: i32) -> (i32, i32) {
    %c0_i32 = arith.constant 0 : i32
    %c0_i32_0 = arith.constant 0 : i32
    return %arg0, %c0_i32 : i32, i32
  }
}

</mosaic_0001>

<llo_original>
// kernel: tpu_custom_call.1
$region0: #{tpu_custom_call.1}
  #allocation0 [shape = 'u32[]', space=smem, size = 0x4, offset = 0x4, fixed_abs, tag = 'smem constant byte address 0x4 - core index']
  #allocation1 [shape = 'u32[144,128]{1,0:T(1,128)}', space=vmem, size = 0x12000, scoped, tag = 'internal scratch']
  %s0 = inlined_call_operand.hbm [shape: f32[2,20], index: 0, kind: input, shape index: {}]
  %s1 = inlined_call_operand.hbm [shape: f32[20,64], index: 1, kind: input, shape index: {}]
  %s2 = inlined_call_operand.hbm [shape: f32[2,64], index: 2, kind: output, shape index: {}]
  %s3 = sld [smem:[#allocation0]]
  $region26: #{tpu_custom_call.1} parent=0
    _
  %s5 = ssub.s32 1, %s3
  %s6 = scalar_select 0, %s5, %s3
  $region1: #{tpu_custom_call.1} parent=0
    #allocation2 [shape = 'u8[1024]{0}', space=vmem, size = 0x400, scoped, tag = 'input window, operand 0, single buffered']
    #allocation3 [shape = 's32[1]{0}', space=sflag, size = 0x4, scoped, tag = 'scoped memory for tpu_custom_call.1']
    #allocation4 [shape = 's32[1]{0}', space=sflag, size = 0x4, scoped, tag = 'scoped memory for tpu_custom_call.1']
    #allocation5 [shape = 'u8[12288]{0}', space=vmem, size = 0x3000, scoped, tag = 'input window, operand 1, single buffered']
    #allocation6 [shape = 's32[1]{0}', space=sflag, size = 0x4, scoped, tag = 'scoped memory for tpu_custom_call.1']
    #allocation7 [shape = 'u8[1024]{0}', space=vmem, size = 0x400, scoped, tag = 'output window, operand 0, single buffered']
    %7 = vsyncpa [#allocation3], 0
    %8 = vsyncpa [#allocation6], 0
    %9 = vsyncpa [#allocation4], 0
    // Predicated region
    $region2: #{tpu_custom_call.1} parent=1 // pred_check
      _
    $region3: #{tpu_custom_call.1} parent=1 // pred_check_branch
      %11 = sbr.rel (0) target = $region5
    $region4: #{tpu_custom_call.1} parent=1 // pred_region
      %s13 = ssub.s32 32, 32
      %14 = vsyncadd [#allocation3], %s13
      %s16 = sshll.u32 [#allocation2], 4
      %s17 = int_to_ptr.vmem [resolvable:$true] %s16
      %19 = dma.hbm_to_vmem [thread:$0]  %s0, 32, %s17, [#allocation3]
    $region5: #{tpu_custom_call.1} parent=1 // pred_fallthru
      _
    // Predicated region
    $region6: #{tpu_custom_call.1} parent=1 // pred_check
      _
    $region7: #{tpu_custom_call.1} parent=1 // pred_check_branch
      %21 = sbr.rel (0) target = $region9
    $region8: #{tpu_custom_call.1} parent=1 // pred_region
      %s23 = ssub.s32 384, 384
      %24 = vsyncadd [#allocation6], %s23
      %s25 = sshll.u32 [#allocation5], 4
      %s26 = int_to_ptr.vmem [resolvable:$true] %s25
      %31 = dma.hbm_to_vmem [thread:$0]  %s1, 384, %s26, [#allocation6], 128, 128, 8
    $region9: #{tpu_custom_call.1} parent=1 // pred_fallthru
      _
    // Predicated region
    $region10: #{tpu_custom_call.1} parent=1 // pred_check
      _
    $region11: #{tpu_custom_call.1} parent=1 // pred_check_branch
      %33 = sbr.rel (0) target = $region13
    $region12: #{tpu_custom_call.1} parent=1 // pred_region
      %34 = dma.done [#allocation3], 32
    $region13: #{tpu_custom_call.1} parent=1 // pred_fallthru
      _
    // Predicated region
    $region14: #{tpu_custom_call.1} parent=1 // pred_check
      _
    $region15: #{tpu_custom_call.1} parent=1 // pred_check_branch
      %36 = sbr.rel (0) target = $region17
    $region16: #{tpu_custom_call.1} parent=1 // pred_region
      %37 = dma.done [#allocation6], 384
    $region17: #{tpu_custom_call.1} parent=1 // pred_fallthru
      _
    %v38 = vld [vmem:[#allocation2] sm:$0x3]
    %v39 = vld [vmem:[#allocation5] sm:$0xff]
    %v40 = vld [vmem:[#allocation5 + $0x8] sm:$0xff]
    %v41 = vld [vmem:[#allocation5 + $0x10] sm:$0xf]
    %vm42 = vcmask 162816
    %v44 = vsel %vm42, %v38, 0
    %vm46 = vcmask 1043456
    %v48 = vsel %vm46, %v41, 0
    %50 = vmatprep.subr.mxu0 0.0
    %51 = vmatpush1.msra.mxu0 0.0
    %52 = vmatprep.subr.mxu0 0.0
    %53 = vmatpush1.msra.mxu0 0.0
    %54 = vmatprep.subr.mxu0 0.0
    %55 = vmatpush1.msra.mxu0 0.0
    %56 = vmatprep.subr.mxu0 0.0
    %57 = vmatpush1.msra.mxu0 0.0
    %58 = vmatprep.subr.mxu0 0.0
    %59 = vmatpush1.msra.mxu0 0.0
    %60 = vmatprep.subr.mxu0 0.0
    %61 = vmatpush1.msra.mxu0 0.0
    %62 = vmatprep.subr.mxu0 0.0
    %63 = vmatpush1.msra.mxu0 0.0
    %64 = vmatprep.subr.mxu0 0.0
    %65 = vmatpush1.msra.mxu0 0.0
    %66 = vmatprep.subr.mxu0 0.0
    %67 = vmatpush1.msra.mxu0 0.0
    %68 = vmatprep.subr.mxu0 0.0
    %69 = vmatpush1.msra.mxu0 0.0
    %70 = vmatprep.subr.mxu0 0.0
    %71 = vmatpush1.msra.mxu0 0.0
    %72 = vmatprep.subr.mxu0 0.0
    %73 = vmatpush1.msra.mxu0 0.0
    %74 = vmatprep.subr.mxu0 0.0
    %75 = vmatpush1.msra.mxu0 0.0
    %76 = vmatprep.subr.mxu0 0.0
    %77 = vmatpush1.msra.mxu0 %v48
    %78 = vmatprep.subr.mxu0 0.0
    %79 = vmatpush1.msra.mxu0 %v40
    %80 = vmatprep.subr.mxu0 0.0
    %81 = vmatpush1.msra.mxu0 %v39
    %82 = vmatprep.subr.mxu0 0.0
    %83 = vmatpush2.msra.mxu0 0.0
    %84 = vmatprep.subr.mxu0 0.0
    %85 = vmatpush2.msra.mxu0 0.0
    %86 = vmatprep.subr.mxu0 0.0
    %87 = vmatpush2.msra.mxu0 0.0
    %88 = vmatprep.subr.mxu0 0.0
    %89 = vmatpush2.msra.mxu0 0.0
    %90 = vmatprep.subr.mxu0 0.0
    %91 = vmatpush2.msra.mxu0 0.0
    %92 = vmatprep.subr.mxu0 0.0
    %93 = vmatpush2.msra.mxu0 0.0
    %94 = vmatprep.subr.mxu0 0.0
    %95 = vmatpush2.msra.mxu0 0.0
    %96 = vmatprep.subr.mxu0 0.0
    %97 = vmatpush2.msra.mxu0 0.0
    %98 = vmatprep.subr.mxu0 0.0
    %99 = vmatpush2.msra.mxu0 0.0
    %100 = vmatprep.subr.mxu0 0.0
    %101 = vmatpush2.msra.mxu0 0.0
    %102 = vmatprep.subr.mxu0 0.0
    %103 = vmatpush2.msra.mxu0 0.0
    %104 = vmatprep.subr.mxu0 0.0
    %105 = vmatpush2.msra.mxu0 0.0
    %106 = vmatprep.subr.mxu0 0.0
    %107 = vmatpush2.msra.mxu0 0.0
    %108 = vmatprep.subr.mxu0 0.0
    %109 = vmatpush2.msra.mxu0 0.0
    %110 = vmatprep.subr.mxu0 0.0
    %111 = vmatpush2.msra.mxu0 0.0
    %112 = vmatprep.subr.mxu0 0.0
    %113 = vmatpush2.msra.mxu0 0.0
    %114 = vmatprep.mubr.f32.mxu0 0.0
    %115 = vmatmul.mubr.f32.gmra.mxu0 %v44
    %v116 = vpop.f32.mrf.mxu0
    %v117 = vadd.f32 0.0, %v116
    %v118 = vpop.f32.mrf.mxu0
    %119 = vdwg.mxu0
    %vm120 = vcmask 517120
    %121 = vst.msk [vmem:[#allocation7] sm:$0x3] %vm120, %v117
    // Predicated region
    $region18: #{tpu_custom_call.1} parent=1 // pred_check
      _
    $region19: #{tpu_custom_call.1} parent=1 // pred_check_branch
      %123 = sbr.rel (0) target = $region21
    $region20: #{tpu_custom_call.1} parent=1 // pred_region
      %s125 = ssub.s32 32, 32
      %126 = vsyncadd [#allocation4], %s125
      %s128 = sshll.u32 [#allocation7], 4
      %s129 = int_to_ptr.vmem [resolvable:$true] %s128
      %131 = dma.vmem_to_hbm [thread:$0]  %s129, 32, %s2, [#allocation4]
    $region21: #{tpu_custom_call.1} parent=1 // pred_fallthru
      _
    // Predicated region
    $region22: #{tpu_custom_call.1} parent=1 // pred_check
      _
    $region23: #{tpu_custom_call.1} parent=1 // pred_check_branch
      %133 = sbr.rel (0) target = $region25
    $region24: #{tpu_custom_call.1} parent=1 // pred_region
      %134 = dma.done [#allocation4], 32
    $region25: #{tpu_custom_call.1} parent=1 // pred_fallthru
      _
    %135 = vsyncpa [#allocation3], 1
    %136 = vsyncpa [#allocation6], 1
    %137 = vsyncpa [#allocation4], 1

</llo_original>
